<compile_context>
chip_gen: v6e
topology: v6e:2x2x1
jax: 0.10.0
libtpu: 0.0.40
codegen_flags: <defaults>
</compile_context>

<pallas_src>
import functools

import jax
import jax.numpy as jnp
from jax.experimental import pallas as pl
from jax.experimental.pallas import tpu as pltpu

H = 64  # hidden width


def _sigmoid(z):
    # sigmoid(z) == 0.5 * tanh(0.5 * z) + 0.5  -- single EUP op, muls/adds go to idle VALU slots.
    return 0.5 * jnp.tanh(0.5 * z) + 0.5


def _default_compute_dtype():
    # bf16 VPU/EUP exists on v6e/v7x; v5e (and older) has no bf16 vector datapath.
    try:
        kind = jax.devices()[0].device_kind.lower()
    except Exception:
        return jnp.float32
    if any(tag in kind for tag in ("v2", "v3", "v4", "v5")):
        return jnp.float32
    return jnp.bfloat16


def mlp_kernel(x_ref, cols_ref, w2_ref, b3_ref, o_ref, *, compute_dtype):
    x = x_ref[...]                                   # (1, tm) f32, batch on lanes

    w1 = cols_ref[:, 0:1]                            # (64, 1) static slices of packed params
    b1 = cols_ref[:, 1:2]
    b2 = cols_ref[:, 2:3]
    w3 = cols_ref[:, 3:4]

    # Layer 1: fan-in = 1 -> broadcast multiply on the VPU (MXU would be wasted).
    z1 = w1 * x + b1                                 # (64, tm) f32
    h1 = _sigmoid(z1.astype(compute_dtype))          # tanh on EUP (bf16 on v6e/v7x)

    # Layer 2: the only real matmul; bf16 inputs, f32 accumulation, N = tm (wide).
    z2 = jnp.dot(w2_ref[...], h1.astype(w2_ref.dtype),
                 preferred_element_type=jnp.float32) + b2        # (64, tm) f32
    h2 = _sigmoid(z2.astype(compute_dtype))

    # Layer 3: fan-out = 1 -> elementwise multiply + sublane reduce (XLU), MXU stays free.
    y = jnp.sum(w3 * h2, axis=0, keepdims=True) + b3_ref[...]    # (1, tm) f32

    o_ref[...] = y.astype(o_ref.dtype)               # lane-dense (1, tm) store


def mlp_forward(x, params, *, tm=8192, compute_dtype=None):
    """x: (B, 1) f32. params: w1 (64,1), b1 (64,1), w2 (64,64), b2 (64,1),
    w3_col (64,1), b3 (1,1)  (PyTorch (out, in) weight layout; w3 pre-transposed)."""
    if compute_dtype is None:
        compute_dtype = _default_compute_dtype()
    B = x.shape[0]

    # Tile size: multiple of 128 (lane width); cap at 8192 so the (64, tm) f32
    # intermediates (~2 MiB each) stay far below v7x's 32 MiB scoped VMEM; clamp so
    # the grid has >=2 steps when possible (sharding across v7x's 2 TensorCores).
    tm = max(128, (min(tm, 8192) // 128) * 128)
    tm = min(tm, max(128, pl.cdiv(B, 2 * 128) * 128))
    B_pad = pl.cdiv(B, tm) * tm
    grid = (B_pad // tm,)

    # Layout plumbing stays in the wrapper: (B,1) -> (1, B_pad), zero-padded tail.
    x_t = jnp.pad(x.reshape(1, B).astype(jnp.float32), ((0, 0), (0, B_pad - B)))

    # Pack the four (64,1) column params into one small (64,4) VMEM input.
    cols = jnp.concatenate(
        [params["w1"], params["b1"], params["b2"], params["w3_col"]], axis=1
    ).astype(jnp.float32)                             # (64, 4)
    w2 = params["w2"].astype(jnp.bfloat16)            # MXU inputs in bf16
    b3 = params["b3"].astype(jnp.float32)             # (1, 1)

    full = lambda a: pl.BlockSpec(a.shape, lambda i: (0, 0))  # whole (small) param each step

    cost = pl.CostEstimate(
        flops=B_pad * (2 * H * H + 8 * H),
        transcendentals=2 * H * B_pad,                # two tanh layers of width H
        bytes_accessed=4 * 2 * B_pad + 4 * (H * 4 + 1) + 2 * H * H,
    )

    kernel = functools.partial(mlp_kernel, compute_dtype=compute_dtype)

    out_t = pl.pallas_call(
        kernel,
        out_shape=jax.ShapeDtypeStruct((1, B_pad), jnp.float32),
        grid_spec=pltpu.PrefetchScalarGridSpec(
            num_scalar_prefetch=0,
            grid=grid,
            in_specs=[
                pl.BlockSpec((1, tm), lambda i: (0, i)),   # x tile, lane-dense
                full(cols),
                full(w2),
                full(b3),
            ],
            out_specs=pl.BlockSpec((1, tm), lambda i: (0, i)),
        ),
        compiler_params=pltpu.CompilerParams(
            dimension_semantics=("parallel",),
        ),
        cost_estimate=cost,
    )(x_t, cols, w2, b3)

    return out_t[:, :B].T                             # back to (B, 1)


def init_params(key):
    """nn.Linear-style U(-1/sqrt(fan_in), 1/sqrt(fan_in)) init, kernel layouts."""
    ks = jax.random.split(key, 6)

    def linear(kw, kb, fan_in, fan_out):
        bound = 1.0 / (fan_in ** 0.5)
        w = jax.random.uniform(kw, (fan_out, fan_in), jnp.float32, -bound, bound)
        b = jax.random.uniform(kb, (fan_out, 1), jnp.float32, -bound, bound)
        return w, b

    w1, b1 = linear(ks[0], ks[1], 1, H)        # (64, 1), (64, 1)
    w2, b2 = linear(ks[2], ks[3], H, H)        # (64, 64), (64, 1)
    w3, b3 = linear(ks[4], ks[5], H, 1)        # (1, 64), (1, 1)
    return dict(w1=w1, b1=b1, w2=w2, b2=b2, w3_col=w3.T, b3=b3)


def mlp_reference(x, p):
    h1 = jax.nn.sigmoid(x @ p["w1"].T + p["b1"].T)     # (B, 64)
    h2 = jax.nn.sigmoid(h1 @ p["w2"].T + p["b2"].T)    # (B, 64)
    return h2 @ p["w3_col"] + p["b3"]                  # (B, 1)


if __name__ == "__main__":
    key = jax.random.PRNGKey(0)
    kp, kx = jax.random.split(key)
    params = init_params(kp)

    B = 200                                   # deliberately not a multiple of the tile
    x = jax.random.normal(kx, (B, 1), jnp.float32)

    compute_dtype = _default_compute_dtype()
    out = mlp_forward(x, params, compute_dtype=compute_dtype)   # clamp -> tm=128, 2-step grid
    out = jax.block_until_ready(out)

    ref = mlp_reference(x, params)
    assert out.shape == (B, 1)
    err = float(jnp.max(jnp.abs(out - ref)))
    # bf16 vector math (v6e/v7x) is looser than the f32 (v5e) path; matmul is bf16 on both.
    tol = 3e-2 if compute_dtype == jnp.bfloat16 else 1e-2
    assert err < tol, f"max abs error {err} (tol {tol}, dtype {compute_dtype})"
    print("KERNEL_OK")
</pallas_src>

<mosaic_0001>
module attributes {stable_mosaic.version = 11 : i64} {
  func.func @mlp_kernel(%arg0: i32, %arg1: memref<1x128xf32, #tpu.memory_space<vmem>>, %arg2: memref<64x4xf32, #tpu.memory_space<vmem>>, %arg3: memref<64x64xbf16, #tpu.memory_space<vmem>>, %arg4: memref<1x1xf32, #tpu.memory_space<vmem>>, %arg5: memref<1x128xf32, #tpu.memory_space<vmem>>) attributes {dimension_semantics = [#tpu.dimension_semantics<parallel>], iteration_bounds = array<i64: 2>, scalar_prefetch = 0 : i64, scratch_operands = 0 : i64, tpu.core_type = #tpu.core_type<tc>, window_params = [{transform_indices = @transform_0, window_bounds = array<i64: 1, 128>}, {pipeline_mode = #tpu.pipeline_mode<synchronous>, transform_indices = @transform_1, window_bounds = array<i64: 64, 4>}, {pipeline_mode = #tpu.pipeline_mode<synchronous>, transform_indices = @transform_2, window_bounds = array<i64: 64, 64>}, {pipeline_mode = #tpu.pipeline_mode<synchronous>, transform_indices = @transform_3, window_bounds = array<i64: 1, 1>}, {transform_indices = @transform_4, window_bounds = array<i64: 1, 128>}]} {
    %c0 = arith.constant 0 : index
    %c0_0 = arith.constant 0 : index
    %0 = vector.load %arg1[%c0, %c0_0] : memref<1x128xf32, #tpu.memory_space<vmem>>, vector<1x128xf32>
    %c0_1 = arith.constant 0 : index
    %c0_2 = arith.constant 0 : index
    %1 = vector.load %arg2[%c0_1, %c0_2] : memref<64x4xf32, #tpu.memory_space<vmem>>, vector<64x1xf32>
    %c0_3 = arith.constant 0 : index
    %c1 = arith.constant 1 : index
    %2 = vector.load %arg2[%c0_3, %c1] : memref<64x4xf32, #tpu.memory_space<vmem>>, vector<64x1xf32>
    %c0_4 = arith.constant 0 : index
    %c2 = arith.constant 2 : index
    %3 = vector.load %arg2[%c0_4, %c2] : memref<64x4xf32, #tpu.memory_space<vmem>>, vector<64x1xf32>
    %c0_5 = arith.constant 0 : index
    %c3 = arith.constant 3 : index
    %4 = vector.load %arg2[%c0_5, %c3] : memref<64x4xf32, #tpu.memory_space<vmem>>, vector<64x1xf32>
    %5 = vector.broadcast %1 : vector<64x1xf32> to vector<64x128xf32>
    %6 = vector.broadcast %0 : vector<1x128xf32> to vector<64x128xf32>
    %7 = arith.mulf %5, %6 : vector<64x128xf32>
    %8 = vector.broadcast %2 : vector<64x1xf32> to vector<64x128xf32>
    %9 = arith.addf %7, %8 : vector<64x128xf32>
    %10 = arith.truncf %9 : vector<64x128xf32> to vector<64x128xbf16>
    %cst = arith.constant 5.000000e-01 : bf16
    %11 = vector.broadcast %cst : bf16 to vector<64x128xbf16>
    %12 = arith.mulf %11, %10 : vector<64x128xbf16>
    %13 = math.tanh %12 : vector<64x128xbf16>
    %cst_6 = arith.constant 5.000000e-01 : bf16
    %14 = vector.broadcast %cst_6 : bf16 to vector<64x128xbf16>
    %15 = arith.mulf %14, %13 : vector<64x128xbf16>
    %cst_7 = arith.constant 5.000000e-01 : bf16
    %16 = vector.broadcast %cst_7 : bf16 to vector<64x128xbf16>
    %17 = arith.addf %15, %16 : vector<64x128xbf16>
    %c0_8 = arith.constant 0 : index
    %c0_9 = arith.constant 0 : index
    %18 = vector.load %arg3[%c0_8, %c0_9] : memref<64x64xbf16, #tpu.memory_space<vmem>>, vector<64x64xbf16>
    %cst_10 = arith.constant dense<0.000000e+00> : vector<64x128xf32>
    %19 = tpu.matmul %18, %17, %cst_10 {dimension_numbers = #tpu.dot_dimension_numbers<[1], [0], [0], [1], [0, 0, 1, 1], [], []>} : vector<64x64xbf16>, vector<64x128xbf16>, vector<64x128xf32> -> vector<64x128xf32>
    %20 = vector.broadcast %3 : vector<64x1xf32> to vector<64x128xf32>
    %21 = arith.addf %19, %20 : vector<64x128xf32>
    %22 = arith.truncf %21 : vector<64x128xf32> to vector<64x128xbf16>
    %cst_11 = arith.constant 5.000000e-01 : bf16
    %23 = vector.broadcast %cst_11 : bf16 to vector<64x128xbf16>
    %24 = arith.mulf %23, %22 : vector<64x128xbf16>
    %25 = math.tanh %24 : vector<64x128xbf16>
    %cst_12 = arith.constant 5.000000e-01 : bf16
    %26 = vector.broadcast %cst_12 : bf16 to vector<64x128xbf16>
    %27 = arith.mulf %26, %25 : vector<64x128xbf16>
    %cst_13 = arith.constant 5.000000e-01 : bf16
    %28 = vector.broadcast %cst_13 : bf16 to vector<64x128xbf16>
    %29 = arith.addf %27, %28 : vector<64x128xbf16>
    %30 = arith.extf %29 : vector<64x128xbf16> to vector<64x128xf32>
    %31 = vector.broadcast %4 : vector<64x1xf32> to vector<64x128xf32>
    %32 = arith.mulf %31, %30 : vector<64x128xf32>
    %cst_14 = arith.constant dense<0.000000e+00> : vector<128xf32>
    %33 = vector.multi_reduction <add>, %32, %cst_14 [0] : vector<64x128xf32> to vector<128xf32>
    %34 = vector.shape_cast %33 : vector<128xf32> to vector<1x128xf32>
    %c0_15 = arith.constant 0 : index
    %c0_16 = arith.constant 0 : index
    %35 = vector.load %arg4[%c0_15, %c0_16] : memref<1x1xf32, #tpu.memory_space<vmem>>, vector<1x1xf32>
    %36 = vector.broadcast %35 : vector<1x1xf32> to vector<1x128xf32>
    %37 = arith.addf %34, %36 : vector<1x128xf32>
    %c0_17 = arith.constant 0 : index
    %c0_18 = arith.constant 0 : index
    %38 = vector.load %arg5[%c0_17, %c0_18] : memref<1x128xf32, #tpu.memory_space<vmem>>, vector<1x128xf32>
    tpu.vector_store %arg5[%c0_17, %c0_18], %37 {strides = array<i32>} : memref<1x128xf32, #tpu.memory_space<vmem>>, vector<1x128xf32>,
    return
  }
  func.func @transform_0(%arg0: i32) -> (i32, i32) {
    %c0_i32 = arith.constant 0 : i32
    %c0_i32_0 = arith.constant 0 : i32
    return %c0_i32, %arg0 : i32, i32
  }
  func.func @transform_1(%arg0: i32) -> (i32, i32) {
    %c0_i32 = arith.constant 0 : i32
    %c0_i32_0 = arith.constant 0 : i32
    %c0_i32_1 = arith.constant 0 : i32
    return %c0_i32, %c0_i32_0 : i32, i32
  }
  func.func @transform_2(%arg0: i32) -> (i32, i32) {
    %c0_i32 = arith.constant 0 : i32
    %c0_i32_0 = arith.constant 0 : i32
    %c0_i32_1 = arith.constant 0 : i32
    return %c0_i32, %c0_i32_0 : i32, i32
  }
  func.func @transform_3(%arg0: i32) -> (i32, i32) {
    %c0_i32 = arith.constant 0 : i32
    %c0_i32_0 = arith.constant 0 : i32
    %c0_i32_1 = arith.constant 0 : i32
    return %c0_i32, %c0_i32_0 : i32, i32
  }
  func.func @transform_4(%arg0: i32) -> (i32, i32) {
    %c0_i32 = arith.constant 0 : i32
    %c0_i32_0 = arith.constant 0 : i32
    return %c0_i32, %arg0 : i32, i32
  }
}

</mosaic_0001>

<llo_original>
// kernel: tpu_custom_call.1
$region0: #{tpu_custom_call.1}
  #allocation0 [shape = 'u32[]', space=smem, size = 0x4, offset = 0x4, fixed_abs, tag = 'smem constant byte address 0x4 - core index']
  #allocation1 [shape = 'u32[144,128]{1,0:T(1,128)}', space=vmem, size = 0x12000, scoped, tag = 'internal scratch']
  #allocation2 [shape = 'f32[1,1]{1,0:T(1,128)S(1)}', space=vmem, size = 0x200, scoped, tag = 'scoped memory for tpu_custom_call.1']
  %s0 = inlined_call_operand.vmem [shape: f32[1,256], index: 0, kind: input, shape index: {}]
  %s1 = inlined_call_operand.vmem [shape: f32[64,4], index: 1, kind: input, shape index: {}]
  %s2 = inlined_call_operand.vmem [shape: bf16[64,64], index: 2, kind: input, shape index: {}]
  %s3 = inlined_call_operand.<no memory space> [shape: f32[1,1], index: 3, kind: input, shape index: {}]
  %s4 = inlined_call_operand.hbm [shape: f32[1,256], index: 4, kind: output, shape index: {}]
  %s5 = sld [smem:[#allocation0]]
  $region49: #{tpu_custom_call.1} parent=0
    _
  %s7 = ssub.s32 1, %s5
  %s8 = scalar_select 0, %s7, %s5
  %v9 = vstv %s3
  %10 = vst [vmem:[#allocation2] sm:$0x1] %v9
  $region1: #{tpu_custom_call.1} parent=0
    #allocation3 [shape = 'u8[1024]{0}', space=vmem, size = 0x400, scoped, tag = 'output window, operand 0']
    #allocation4 [shape = 's32[2]{0}', space=sflag, size = 0x8, scoped, tag = 'scoped memory for tpu_custom_call.1']
    %11 = vsyncpa [#allocation4], 0
    %s12 = scalar_lea.sflag [#allocation4], 1
    %13 = vsyncpa %s12, 0
    loop: start=0, step=1, limit=4
    $region2: #{tpu_custom_call.1} parent=1 // loop_pre_header
      _
    $region3: #{tpu_custom_call.1} parent=1 // loop_header
      %s15 = sphi 0, %s19
      %p16 = scmp.ge.s32.totalorder %s15, 4
      %s25 = sphi 0, %s27
      %s28 = sphi 0, %s25
      %s29 = sphi 0, %s28
      %s45 = sphi 0, %s29
      %s49 = sphi 0, %s49
      %s51 = sphi 0, %s49
      %s52 = sphi 0, %s51
      %s66 = sphi 0, %s52
      %s70 = sphi 0, %s70
      %s72 = sphi 0, %s70
      %s73 = sphi 0, %s72
      %s87 = sphi 0, %s73
      %s91 = sphi 0, %s91
      %s93 = sphi 0, %s91
      %s94 = sphi 0, %s93
      %s108 = sphi 0, %s94
      %s114 = sphi 0, %s116
      %s117 = sphi 0, %s114
      %s118 = sphi 0, %s117
      %s134 = sphi 0, %s118
    $region4: #{tpu_custom_call.1} parent=1 // loop_header_branch
      %18 = sbr.rel (%p16) target = $region8
    $region5: #{tpu_custom_call.1} parent=1 // loop_body
      %s20 = ssub.s32 %s15, 1
      %s21 = ssub.s32 %s15, 2
      %s22 = sadd.s32 %s15, 1
      %s23 = ssub.s32 %s15, %s22
      %p24 = scmp.eq.s32.totalorder %s23, 0
      %s26 = sadd.s32 %s25, 1
      %s27 = scalar_select %p24, %s25, %s26
      %p30 = pneg %p24
      %p31 = scmp.eq.s32.totalorder %s15, 1
      %p32 = por %p30, %p31
      %p33 = scmp.ne.s32.totalorder %s25, %s28
      %p34 = scmp.eq.s32.totalorder %s15, 0
      %p35 = por %p33, %p34
      %p36 = scmp.ne.s32.totalorder %s25, %s28
      %p37 = scmp.eq.s32.totalorder %s20, 1
      %p38 = por %p36, %p37
      %p39 = scmp.ne.s32.totalorder %s28, %s29
      %p40 = scmp.eq.s32.totalorder %s20, 0
      %p41 = por %p39, %p40
      %p42 = scmp.ne.s32.totalorder %s28, %s29
      %p43 = scmp.eq.s32.totalorder %s21, 1
      %p44 = por %p42, %p43
      %p46 = scmp.ne.s32.totalorder %s29, %s45
      %p47 = scmp.eq.s32.totalorder %s21, 0
      %p48 = por %p46, %p47
      %s50 = sadd.s32 %s49, 1
      %p53 = scmp.eq.s32.totalorder %s15, 1
      %p54 = scmp.ne.s32.totalorder %s49, %s51
      %p55 = scmp.eq.s32.totalorder %s15, 0
      %p56 = por %p54, %p55
      %p57 = scmp.ne.s32.totalorder %s49, %s51
      %p58 = scmp.eq.s32.totalorder %s20, 1
      %p59 = por %p57, %p58
      %p60 = scmp.ne.s32.totalorder %s51, %s52
      %p61 = scmp.eq.s32.totalorder %s20, 0
      %p62 = por %p60, %p61
      %p63 = scmp.ne.s32.totalorder %s51, %s52
      %p64 = scmp.eq.s32.totalorder %s21, 1
      %p65 = por %p63, %p64
      %p67 = scmp.ne.s32.totalorder %s52, %s66
      %p68 = scmp.eq.s32.totalorder %s21, 0
      %p69 = por %p67, %p68
      %s71 = sadd.s32 %s70, 1
      %p74 = scmp.eq.s32.totalorder %s15, 1
      %p75 = scmp.ne.s32.totalorder %s70, %s72
      %p76 = scmp.eq.s32.totalorder %s15, 0
      %p77 = por %p75, %p76
      %p78 = scmp.ne.s32.totalorder %s70, %s72
      %p79 = scmp.eq.s32.totalorder %s20, 1
      %p80 = por %p78, %p79
      %p81 = scmp.ne.s32.totalorder %s72, %s73
      %p82 = scmp.eq.s32.totalorder %s20, 0
      %p83 = por %p81, %p82
      %p84 = scmp.ne.s32.totalorder %s72, %s73
      %p85 = scmp.eq.s32.totalorder %s21, 1
      %p86 = por %p84, %p85
      %p88 = scmp.ne.s32.totalorder %s73, %s87
      %p89 = scmp.eq.s32.totalorder %s21, 0
      %p90 = por %p88, %p89
      %s92 = sadd.s32 %s91, 1
      %p95 = scmp.eq.s32.totalorder %s15, 1
      %p96 = scmp.ne.s32.totalorder %s91, %s93
      %p97 = scmp.eq.s32.totalorder %s15, 0
      %p98 = por %p96, %p97
      %p99 = scmp.ne.s32.totalorder %s91, %s93
      %p100 = scmp.eq.s32.totalorder %s20, 1
      %p101 = por %p99, %p100
      %p102 = scmp.ne.s32.totalorder %s93, %s94
      %p103 = scmp.eq.s32.totalorder %s20, 0
      %p104 = por %p102, %p103
      %p105 = scmp.ne.s32.totalorder %s93, %s94
      %p106 = scmp.eq.s32.totalorder %s21, 1
      %p107 = por %p105, %p106
      %p109 = scmp.ne.s32.totalorder %s94, %s108
      %p110 = scmp.eq.s32.totalorder %s21, 0
      %p111 = por %p109, %p110
      %s112 = ssub.s32 %s15, %s22
      %p113 = scmp.eq.s32.totalorder %s112, 0
      %s115 = sadd.s32 %s114, 1
      %s116 = scalar_select %p113, %s114, %s115
      %p119 = pneg %p113
      %p120 = scmp.eq.s32.totalorder %s15, 1
      %p121 = por %p119, %p120
      %p122 = scmp.ne.s32.totalorder %s114, %s117
      %p123 = scmp.eq.s32.totalorder %s15, 0
      %p124 = por %p122, %p123
      %p125 = scmp.ne.s32.totalorder %s114, %s117
      %p126 = scmp.eq.s32.totalorder %s20, 1
      %p127 = por %p125, %p126
      %p128 = scmp.ne.s32.totalorder %s117, %s118
      %p129 = scmp.eq.s32.totalorder %s20, 0
      %p130 = por %p128, %p129
      %p131 = scmp.ne.s32.totalorder %s117, %s118
      %p132 = scmp.eq.s32.totalorder %s21, 1
      %p133 = por %p131, %p132
      %p135 = scmp.ne.s32.totalorder %s118, %s134
      %p136 = scmp.eq.s32.totalorder %s21, 0
      %p137 = por %p135, %p136
      %p138 = scmp.le.s32.totalorder 1, %s15
      %p139 = scmp.lt.s32.totalorder %s15, 3
      %p140 = pnand %p138, %p139
      %p141 = pneg %p140
      // Predicated region
      $region9: #{tpu_custom_call.1} parent=5 // pred_check
        _
      $region10: #{tpu_custom_call.1} parent=5 // pred_check_branch
        %143 = sbr.rel (%p140) target = $region12
      $region11: #{tpu_custom_call.1} parent=5 // pred_region
        %s144 = ssub.s32 %s15, 1
        // Predicated region
        $region13: #{tpu_custom_call.1} parent=11 // pred_check
          %p145 = pneg %p62
        $region14: #{tpu_custom_call.1} parent=11 // pred_check_branch
          %147 = sbr.rel (%p145) target = $region16
        $region15: #{tpu_custom_call.1} parent=11 // pred_region
          _
        $region16: #{tpu_custom_call.1} parent=11 // pred_fallthru
          _
        // Predicated region
        $region17: #{tpu_custom_call.1} parent=11 // pred_check
          %p148 = pneg %p83
        $region18: #{tpu_custom_call.1} parent=11 // pred_check_branch
          %150 = sbr.rel (%p148) target = $region20
        $region19: #{tpu_custom_call.1} parent=11 // pred_region
          _
        $region20: #{tpu_custom_call.1} parent=11 // pred_fallthru
          _
        // Predicated region
        $region21: #{tpu_custom_call.1} parent=11 // pred_check
          %p151 = pneg %p104
        $region22: #{tpu_custom_call.1} parent=11 // pred_check_branch
          %153 = sbr.rel (%p151) target = $region24
        $region23: #{tpu_custom_call.1} parent=11 // pred_region
          _
        $region24: #{tpu_custom_call.1} parent=11 // pred_fallthru
          _
      $region12: #{tpu_custom_call.1} parent=5 // pred_fallthru
        _
      %p154 = scmp.lt.s32.totalorder %s15, 2
      // Predicated region
      $region25: #{tpu_custom_call.1} parent=5 // pred_check
        %p155 = pneg %p154
      $region26: #{tpu_custom_call.1} parent=5 // pred_check_branch
        %157 = sbr.rel (%p155) target = $region28
      $region27: #{tpu_custom_call.1} parent=5 // pred_region
        // Predicated region
        $region29: #{tpu_custom_call.1} parent=27 // pred_check
          %p158 = pneg %p35
        $region30: #{tpu_custom_call.1} parent=27 // pred_check_branch
          %160 = sbr.rel (%p158) target = $region32
        $region31: #{tpu_custom_call.1} parent=27 // pred_region
          %p161 = scmp.lt.s32.totalorder %s15, 1
          %s162 = scalar_select %p161, %s15, 1
          %s163 = scalar_lea.vmem %s0, %s162
        $region32: #{tpu_custom_call.1} parent=27 // pred_fallthru
          _
      $region28: #{tpu_custom_call.1} parent=5 // pred_fallthru
        _
      %p164 = scmp.le.s32.totalorder 1, %s15
      %p165 = scmp.lt.s32.totalorder %s15, 3
      %p166 = pnand %p164, %p165
      %p167 = pneg %p166
      // Predicated region
      $region33: #{tpu_custom_call.1} parent=5 // pred_check
        _
      $region34: #{tpu_custom_call.1} parent=5 // pred_check_branch
        %169 = sbr.rel (%p166) target = $region36
      $region35: #{tpu_custom_call.1} parent=5 // pred_region
        %s170 = ssub.s32 %s15, 1
        %p171 = scmp.lt.s32.totalorder %s20, 1
        %s172 = scalar_select %p171, %s20, 1
        %s173 = scalar_lea.vmem %s0, %s172
        %p174 = pneg %p41
        %p175 = pneg %p38
        %p176 = pneg %p62
        %p177 = pneg %p59
        %p178 = pneg %p83
        %p179 = pneg %p80
        %p180 = pneg %p104
        %p181 = pneg %p101
        %p182 = pneg %p130
        %p183 = pneg %p127
        %s184 = sand.u32 %s117, 1
        %s185 = scalar_lea.sflag [#allocation4], %s184
        %s186 = sand.u32 %s117, 1
        %s187 = scalar_lea.vmem [#allocation3], %s186
        %p188 = scmp.lt.s32.totalorder %s20, 1
        %s189 = scalar_select %p188, %s20, 1
        %s190 = scalar_lea.vmem %s0, %s189
        %v193 = vld [vmem:[%s190] sm:$0x1]
        %v194 = vld [vmem:[%s1] sm:$0xff]
        %v195 = vld [vmem:[%s1 + $0x8] sm:$0xff]
        %v196 = vld [vmem:[%s1 + $0x10] sm:$0xff]
        %v197 = vld [vmem:[%s1 + $0x18] sm:$0xff]
        %v198 = vld [vmem:[%s1 + $0x20] sm:$0xff]
        %v199 = vld [vmem:[%s1 + $0x28] sm:$0xff]
        %v200 = vld [vmem:[%s1 + $0x30] sm:$0xff]
        %v201 = vld [vmem:[%s1 + $0x38] sm:$0xff]
        %203 = vset.pattern.permute.xlu0 0
        %204 = vperm.xlu0 %203, %v194
        %v205 = vpop.permute.xlu0 %204
        %208 = vset.pattern.permute.xlu0 0
        %209 = vperm.xlu0 %208, %v195
        %v210 = vpop.permute.xlu0 %209
        %213 = vset.pattern.permute.xlu0 0
        %214 = vperm.xlu0 %213, %v196
        %v215 = vpop.permute.xlu0 %214
        %218 = vset.pattern.permute.xlu0 0
        %219 = vperm.xlu0 %218, %v197
        %v220 = vpop.permute.xlu0 %219
        %223 = vset.pattern.permute.xlu0 0
        %224 = vperm.xlu0 %223, %v198
        %v225 = vpop.permute.xlu0 %224
        %228 = vset.pattern.permute.xlu0 0
        %229 = vperm.xlu0 %228, %v199
        %v230 = vpop.permute.xlu0 %229
        %233 = vset.pattern.permute.xlu0 0
        %234 = vperm.xlu0 %233, %v200
        %v235 = vpop.permute.xlu0 %234
        %238 = vset.pattern.permute.xlu0 0
        %239 = vperm.xlu0 %238, %v201
        %v240 = vpop.permute.xlu0 %239
        %v243 = vlaneseq
        %v244 = vshrl.u32 %v243, 7
        %v245 = vsub.s32 0, %v244
        %v246 = vrot.slane %v193, %v245
        %v248 = vmul.f32 %v205, %v246
        %v249 = vmul.f32 %v210, %v246
        %v250 = vmul.f32 %v215, %v246
        %v251 = vmul.f32 %v220, %v246
        %v252 = vmul.f32 %v225, %v246
        %v253 = vmul.f32 %v230, %v246
        %v254 = vmul.f32 %v235, %v246
        %v255 = vmul.f32 %v240, %v246
        %256 = vset.pattern.permute.xlu0 1
        %257 = vperm.xlu0 %256, %v194
        %v258 = vpop.permute.xlu0 %257
        %260 = vset.pattern.permute.xlu0 1
        %261 = vperm.xlu0 %260, %v195
        %v262 = vpop.permute.xlu0 %261
        %264 = vset.pattern.permute.xlu0 1
        %265 = vperm.xlu0 %264, %v196
        %v266 = vpop.permute.xlu0 %265
        %268 = vset.pattern.permute.xlu0 1
        %269 = vperm.xlu0 %268, %v197
        %v270 = vpop.permute.xlu0 %269
        %272 = vset.pattern.permute.xlu0 1
        %273 = vperm.xlu0 %272, %v198
        %v274 = vpop.permute.xlu0 %273
        %276 = vset.pattern.permute.xlu0 1
        %277 = vperm.xlu0 %276, %v199
        %v278 = vpop.permute.xlu0 %277
        %280 = vset.pattern.permute.xlu0 1
        %281 = vperm.xlu0 %280, %v200
        %v282 = vpop.permute.xlu0 %281
        %284 = vset.pattern.permute.xlu0 1
        %285 = vperm.xlu0 %284, %v201
        %v286 = vpop.permute.xlu0 %285
        %v288 = vadd.f32 %v248, %v258
        %v289 = vadd.f32 %v249, %v262
        %v290 = vadd.f32 %v250, %v266
        %v291 = vadd.f32 %v251, %v270
        %v292 = vadd.f32 %v252, %v274
        %v293 = vadd.f32 %v253, %v278
        %v294 = vadd.f32 %v254, %v282
        %v295 = vadd.f32 %v255, %v286
        %v296 = vpack.c.bf16 %v289, %v288
        %v297 = vpack.c.bf16 %v291, %v290
        %v298 = vpack.c.bf16 %v293, %v292
        %v299 = vpack.c.bf16 %v295, %v294
        %v300 = vmul.bf16 %v296, 1056980736
        %v301 = vmul.bf16 %v297, 1056980736
        %v302 = vmul.bf16 %v298, 1056980736
        %v303 = vmul.bf16 %v299, 1056980736
        %v304 = vtanh.bf16.pop %v300
        %v305 = vtanh.bf16.pop %v301
        %v306 = vtanh.bf16.pop %v302
        %v307 = vtanh.bf16.pop %v303
        %v308 = vmul.bf16 %v304, 1056980736
        %v309 = vmul.bf16 %v305, 1056980736
        %v310 = vmul.bf16 %v306, 1056980736
        %v311 = vmul.bf16 %v307, 1056980736
        %v312 = vadd.bf16 %v308, 1056980736
        %v313 = vadd.bf16 %v309, 1056980736
        %v314 = vadd.bf16 %v310, 1056980736
        %v315 = vadd.bf16 %v311, 1056980736
        %v316 = vld [vmem:[%s2] sm:$0xf]
        %v317 = vld [vmem:[%s2 + $0x4] sm:$0xf]
        %v318 = vld [vmem:[%s2 + $0x8] sm:$0xf]
        %v319 = vld [vmem:[%s2 + $0xc] sm:$0xf]
        %v320 = vld [vmem:[%s2 + $0x10] sm:$0xf]
        %v321 = vld [vmem:[%s2 + $0x14] sm:$0xf]
        %v322 = vld [vmem:[%s2 + $0x18] sm:$0xf]
        %v323 = vld [vmem:[%s2 + $0x1c] sm:$0xf]
        %324 = vset.pattern.permute.xlu0 2
        %325 = vperm.xlu0 %324, %v194
        %v326 = vpop.permute.xlu0 %325
        %328 = vset.pattern.permute.xlu0 2
        %329 = vperm.xlu0 %328, %v195
        %v330 = vpop.permute.xlu0 %329
        %332 = vset.pattern.permute.xlu0 2
        %333 = vperm.xlu0 %332, %v196
        %v334 = vpop.permute.xlu0 %333
        %336 = vset.pattern.permute.xlu0 2
        %337 = vperm.xlu0 %336, %v197
        %v338 = vpop.permute.xlu0 %337
        %340 = vset.pattern.permute.xlu0 2
        %341 = vperm.xlu0 %340, %v198
        %v342 = vpop.permute.xlu0 %341
        %344 = vset.pattern.permute.xlu0 2
        %345 = vperm.xlu0 %344, %v199
        %v346 = vpop.permute.xlu0 %345
        %348 = vset.pattern.permute.xlu0 2
        %349 = vperm.xlu0 %348, %v200
        %v350 = vpop.permute.xlu0 %349
        %352 = vset.pattern.permute.xlu0 2
        %353 = vperm.xlu0 %352, %v201
        %v354 = vpop.permute.xlu0 %353
        %v364 = vunpack.c.l.b16 %v316
        %v365 = vunpack.c.l.b16 %v317
        %v366 = vunpack.c.l.b16 %v318
        %v367 = vunpack.c.l.b16 %v319
        %v368 = vunpack.c.l.b16 %v320
        %v369 = vunpack.c.l.b16 %v321
        %v370 = vunpack.c.l.b16 %v322
        %v371 = vunpack.c.l.b16 %v323
        %v372 = vpack.c.b16 %v365, %v364
        %v373 = vpack.c.b16 %v367, %v366
        %v374 = vpack.c.b16 %v369, %v368
        %v375 = vpack.c.b16 %v371, %v370
        %vm376 = vcmask 523264
        %v378 = vsel %vm376, %v372, 0
        %v381 = vsel %vm376, %v373, 0
        %v384 = vsel %vm376, %v374, 0
        %v387 = vsel %vm376, %v375, 0
        %389 = vmatprep.subr.bf16.mxu0 0
        %390 = vmatpush1.bf16.msra.mxu0 0
        %391 = vmatprep.subr.bf16.mxu0 0
        %392 = vmatpush1.bf16.msra.mxu0 0
        %393 = vmatprep.subr.bf16.mxu0 0
        %394 = vmatpush1.bf16.msra.mxu0 0
        %395 = vmatprep.subr.bf16.mxu0 0
        %396 = vmatpush1.bf16.msra.mxu0 0
        %397 = vmatprep.subr.bf16.mxu0 0
        %398 = vmatpush1.bf16.msra.mxu0 %v315
        %399 = vmatprep.subr.bf16.mxu0 0
        %400 = vmatpush1.bf16.msra.mxu0 %v314
        %401 = vmatprep.subr.bf16.mxu0 0
        %402 = vmatpush1.bf16.msra.mxu0 %v313
        %403 = vmatprep.subr.bf16.mxu0 0
        %404 = vmatpush1.bf16.msra.mxu0 %v312
        %405 = vmatprep.subr.bf16.mxu0 0
        %406 = vmatpush2.bf16.msra.mxu0 0
        %407 = vmatprep.subr.bf16.mxu0 0
        %408 = vmatpush2.bf16.msra.mxu0 0
        %409 = vmatprep.subr.bf16.mxu0 0
        %410 = vmatpush2.bf16.msra.mxu0 0
        %411 = vmatprep.subr.bf16.mxu0 0
        %412 = vmatpush2.bf16.msra.mxu0 0
        %413 = vmatprep.subr.bf16.mxu0 0
        %414 = vmatpush2.bf16.msra.mxu0 0
        %415 = vmatprep.subr.bf16.mxu0 0
        %416 = vmatpush2.bf16.msra.mxu0 0
        %417 = vmatprep.subr.bf16.mxu0 0
        %418 = vmatpush2.bf16.msra.mxu0 0
        %419 = vmatprep.subr.bf16.mxu0 0
        %420 = vmatpush2.bf16.msra.mxu0 0
        %421 = vmatprep.mubr.bf16.mxu0 0
        %422 = vmatmul.mubr.bf16.gmra.mxu0 %v378
        %v423 = vpop.f32.mrf.mxu0
        %v424 = vadd.f32 %v326, %v423
        %v425 = vpop.f32.mrf.mxu0
        %v426 = vpop.f32.mrf.mxu0
        %v427 = vadd.f32 %v330, %v426
        %v428 = vpop.f32.mrf.mxu0
        %429 = vmatprep.mubr.bf16.mxu0 0
        %430 = vmatmul.mubr.bf16.gmra.mxu0 %v381
        %v431 = vpop.f32.mrf.mxu0
        %v432 = vadd.f32 %v334, %v431
        %v433 = vpop.f32.mrf.mxu0
        %v434 = vpop.f32.mrf.mxu0
        %v435 = vadd.f32 %v338, %v434
        %v436 = vpop.f32.mrf.mxu0
        %437 = vmatprep.mubr.bf16.mxu0 0
        %438 = vmatmul.mubr.bf16.gmra.mxu0 %v384
        %v439 = vpop.f32.mrf.mxu0
        %v440 = vadd.f32 %v342, %v439
        %v441 = vpop.f32.mrf.mxu0
        %v442 = vpop.f32.mrf.mxu0
        %v443 = vadd.f32 %v346, %v442
        %v444 = vpop.f32.mrf.mxu0
        %445 = vmatprep.mubr.bf16.mxu0 0
        %446 = vmatmul.mubr.bf16.gmra.mxu0 %v387
        %v447 = vpop.f32.mrf.mxu0
        %v448 = vadd.f32 %v350, %v447
        %v449 = vpop.f32.mrf.mxu0
        %v450 = vpop.f32.mrf.mxu0
        %v451 = vadd.f32 %v354, %v450
        %v452 = vpop.f32.mrf.mxu0
        %453 = vdwg.mxu0
        %v454 = vpack.c.bf16 %v427, %v424
        %v455 = vpack.c.bf16 %v435, %v432
        %v456 = vpack.c.bf16 %v443, %v440
        %v457 = vpack.c.bf16 %v451, %v448
        %v458 = vmul.bf16 %v454, 1056980736
        %v459 = vmul.bf16 %v455, 1056980736
        %v460 = vmul.bf16 %v456, 1056980736
        %v461 = vmul.bf16 %v457, 1056980736
        %v462 = vtanh.bf16.pop %v458
        %v463 = vtanh.bf16.pop %v459
        %v464 = vtanh.bf16.pop %v460
        %v465 = vtanh.bf16.pop %v461
        %v466 = vmul.bf16 %v462, 1056980736
        %v467 = vmul.bf16 %v463, 1056980736
        %v468 = vmul.bf16 %v464, 1056980736
        %v469 = vmul.bf16 %v465, 1056980736
        %v470 = vadd.bf16 %v466, 1056980736
        %v471 = vadd.bf16 %v467, 1056980736
        %v472 = vadd.bf16 %v468, 1056980736
        %v473 = vadd.bf16 %v469, 1056980736
        %v474 = vunpack.c.l.bf16 %v470
        %v475 = vunpack.c.h.bf16 %v470
        %v476 = vunpack.c.l.bf16 %v471
        %v477 = vunpack.c.h.bf16 %v471
        %v478 = vunpack.c.l.bf16 %v472
        %v479 = vunpack.c.h.bf16 %v472
        %v480 = vunpack.c.l.bf16 %v473
        %v481 = vunpack.c.h.bf16 %v473
        %482 = vset.pattern.permute.xlu0 3
        %483 = vperm.xlu0 %482, %v194
        %v484 = vpop.permute.xlu0 %483
        %486 = vset.pattern.permute.xlu0 3
        %487 = vperm.xlu0 %486, %v195
        %v488 = vpop.permute.xlu0 %487
        %490 = vset.pattern.permute.xlu0 3
        %491 = vperm.xlu0 %490, %v196
        %v492 = vpop.permute.xlu0 %491
        %494 = vset.pattern.permute.xlu0 3
        %495 = vperm.xlu0 %494, %v197
        %v496 = vpop.permute.xlu0 %495
        %498 = vset.pattern.permute.xlu0 3
        %499 = vperm.xlu0 %498, %v198
        %v500 = vpop.permute.xlu0 %499
        %502 = vset.pattern.permute.xlu0 3
        %503 = vperm.xlu0 %502, %v199
        %v504 = vpop.permute.xlu0 %503
        %506 = vset.pattern.permute.xlu0 3
        %507 = vperm.xlu0 %506, %v200
        %v508 = vpop.permute.xlu0 %507
        %510 = vset.pattern.permute.xlu0 3
        %511 = vperm.xlu0 %510, %v201
        %v512 = vpop.permute.xlu0 %511
        %v514 = vmul.f32 %v484, %v474
        %v515 = vmul.f32 %v488, %v475
        %v516 = vmul.f32 %v492, %v476
        %v517 = vmul.f32 %v496, %v477
        %v518 = vmul.f32 %v500, %v478
        %v519 = vmul.f32 %v504, %v479
        %v520 = vmul.f32 %v508, %v480
        %v521 = vmul.f32 %v512, %v481
        %v522 = vadd.f32 %v514, %v515
        %v523 = vadd.f32 %v522, %v516
        %v524 = vadd.f32 %v523, %v517
        %v525 = vadd.f32 %v524, %v518
        %v526 = vadd.f32 %v525, %v519
        %v527 = vadd.f32 %v526, %v520
        %v528 = vadd.f32 %v527, %v521
        %v529 = vrot.slane %v528, 4
        %v530 = vadd.f32 %v528, %v529
        %v531 = vrot.slane %v530, 2
        %v532 = vadd.f32 %v530, %v531
        %v533 = vrot.slane %v532, 1
        %v534 = vadd.f32 %v532, %v533
        %v535 = vld [vmem:[#allocation2] sm:$0x1]
        %537 = vset.pattern.permute.xlu0 0
        %538 = vperm.xlu0 %537, %v535
        %v539 = vpop.permute.xlu0 %538
        %v541 = vlaneseq
        %v542 = vshrl.u32 %v541, 7
        %v543 = vsub.s32 0, %v542
        %v544 = vrot.slane %v539, %v543
        %v545 = vadd.f32 %v534, %v544
        %546 = vst [vmem:[%s187] sm:$0x1] %v545
        %s547 = sand.u32 %s117, 1
        %s548 = scalar_lea.sflag [#allocation4], %s547
        %s549 = sand.u32 %s117, 1
        %s550 = scalar_lea.vmem [#allocation3], %s549
        // Predicated region
        $region37: #{tpu_custom_call.1} parent=35 // pred_check
          %p551 = pneg %p127
        $region38: #{tpu_custom_call.1} parent=35 // pred_check_branch
          %553 = sbr.rel (%p551) target = $region40
        $region39: #{tpu_custom_call.1} parent=35 // pred_region
          %s555 = ssub.s32 16, 16
          %556 = vsyncadd %s548, %s555
          %s557 = smul.addr %s20, 16
          %s558 = scalar_lea.hbm %s4, %s557
          %s560 = sshll.u32 %s550, 4
          %s561 = int_to_ptr.vmem [resolvable:$true] %s560
          %563 = dma.vmem_to_hbm [thread:$0]  %s561, 16, %s558, %s548
        $region40: #{tpu_custom_call.1} parent=35 // pred_fallthru
          _
      $region36: #{tpu_custom_call.1} parent=5 // pred_fallthru
        _
      %p564 = scmp.le.s32.totalorder 2, %s15
      // Predicated region
      $region41: #{tpu_custom_call.1} parent=5 // pred_check
        %p565 = pneg %p564
      $region42: #{tpu_custom_call.1} parent=5 // pred_check_branch
        %567 = sbr.rel (%p565) target = $region44
      $region43: #{tpu_custom_call.1} parent=5 // pred_region
        %s568 = ssub.s32 %s15, 2
        // Predicated region
        $region45: #{tpu_custom_call.1} parent=43 // pred_check
          %p569 = pneg %p133
        $region46: #{tpu_custom_call.1} parent=43 // pred_check_branch
          %571 = sbr.rel (%p569) target = $region48
        $region47: #{tpu_custom_call.1} parent=43 // pred_region
          %s572 = sand.u32 %s118, 1
          %s573 = scalar_lea.sflag [#allocation4], %s572
          %s574 = sand.u32 %s118, 1
          %s575 = scalar_lea.vmem [#allocation3], %s574
          %576 = dma.done %s573, 16
        $region48: #{tpu_custom_call.1} parent=43 // pred_fallthru
          _
      $region44: #{tpu_custom_call.1} parent=5 // pred_fallthru
        _
    $region6: #{tpu_custom_call.1} parent=1 // loop_footer
      %s19 = sadd.s32 1, %s15
    $region7: #{tpu_custom_call.1} parent=1 // loop_footer_branch
      %14 = sbr.rel target = $region3
    $region8: #{tpu_custom_call.1} parent=1 // loop_exit
      _
    %577 = vsyncpa [#allocation4], 1
    %s578 = scalar_lea.sflag [#allocation4], 1
    %579 = vsyncpa %s578, 1

</llo_original>
